<compile_context>
chip_gen: v7x
topology: tpu7x:2x2x1
jax: 0.10.0
libtpu: 0.0.40
codegen_flags: <defaults>
</compile_context>

<pallas_src>
import functools
import math

import jax
import jax.numpy as jnp
from jax import lax
from jax.experimental import pallas as pl
from jax.experimental.pallas import tpu as pltpu


def _mhsa_kernel(x_ref, wq_ref, bq_ref, wkv_ref, bkv_ref, wc_ref, o_ref,
                 q_scr, acc_scr, *, head_dim, heads_per_step, key_tile):
    """One (batch, head-group, key-tile) grid step.

    x_ref   : (1, S, H)    bf16  activations (resident across head-group & key-tile axes)
    wq_ref  : (1, H, GD)   bf16  packed query weight for this head group
    bq_ref  : (1, 1, GD)   f32   packed query bias
    wkv_ref : (1, H, 2GD)  bf16  packed [key | value] weight
    bkv_ref : (1, 1, 2GD)  f32   packed [key | value] bias
    wc_ref  : (1, GD, H)   bf16  output-projection rows for this head group (lane dim = H)
    o_ref   : (1, S, H)    f32   output, resident & accumulated across head groups
    q_scr   : (S, GD)      bf16  scaled q, computed at key-tile 0, reused across key tiles
    acc_scr : (S, GD)      f32   sum over key tiles of softmax(qk^T) @ v for this group
    """
    hg = pl.program_id(1)
    kt = pl.program_id(2)

    D = head_dim
    GD = heads_per_step * D
    Tk = key_tile
    dn_nn = (((1,), (0,)), ((), ()))   # A @ B
    dn_nt = (((1,), (1,)), ((), ()))   # A @ B^T  (contract last dims; no transposes)

    @pl.when(jnp.logical_and(hg == 0, kt == 0))
    def _():
        o_ref[...] = jnp.zeros_like(o_ref)

    @pl.when(kt == 0)
    def _():
        # q projection over the full sequence, once per (batch, head group);
        # 1/sqrt(D) folded into q. bf16 operands, f32 accumulation.
        q = lax.dot_general(x_ref[0], wq_ref[0], dn_nn,
                            preferred_element_type=jnp.float32)          # (S, GD)
        q = (q + bq_ref[0]) * (1.0 / math.sqrt(D))
        q_scr[...] = q.astype(jnp.bfloat16)
        acc_scr[...] = jnp.zeros_like(acc_scr)

    # k / v projection only for this key tile's rows of x (streamed over kt).
    start = pl.multiple_of(kt * Tk, Tk)
    xk = x_ref[0, pl.ds(start, Tk), :]                                   # (Tk, H) bf16
    kv = lax.dot_general(xk, wkv_ref[0], dn_nn,
                         preferred_element_type=jnp.float32)             # (Tk, 2GD)
    kv = kv + bkv_ref[0]
    k_t = kv[:, :GD].astype(jnp.bfloat16)
    v_t = kv[:, GD:].astype(jnp.bfloat16)

    # Attention for each head in the group (static loop; projections stay packed).
    for g in range(heads_per_step):
        lo, hi = g * D, (g + 1) * D
        q_h = q_scr[:, lo:hi]                                            # (S, D)
        s = lax.dot_general(q_h, k_t[:, lo:hi], dn_nt,
                            preferred_element_type=jnp.float32)          # (S, Tk)
        # softmax over the QUERY axis (torch dim=2): each key column is
        # independently normalized, so key tiling needs no online carry.
        m = jnp.max(s, axis=0, keepdims=True)
        e = jnp.exp(s - m)
        w = e * pl.reciprocal(jnp.sum(e, axis=0, keepdims=True), approx=True)
        acc_scr[:, lo:hi] += jnp.dot(w.astype(jnp.bfloat16), v_t[:, lo:hi],
                                     preferred_element_type=jnp.float32)

    @pl.when(kt == pl.num_programs(2) - 1)
    def _():
        # One output-projection matmul per head group (contraction depth GD);
        # the head concat never materializes -- partials accumulate into o_ref.
        proj = lax.dot_general(acc_scr[...].astype(jnp.bfloat16), wc_ref[0],
                               dn_nn, preferred_element_type=jnp.float32)
        o_ref[0] += proj.astype(o_ref.dtype)


def _choose_heads_per_step(head_num, head_dim, target=256):
    """Smallest divisor g of head_num with g*head_dim >= target (MXU depth)."""
    for g in range(1, head_num + 1):
        if head_num % g == 0 and g * head_dim >= target:
            return g
    return head_num


def _choose_key_tile(seq_len, max_tile=512):
    if seq_len <= max_tile:
        return seq_len
    for t in (512, 256, 128):
        if seq_len % t == 0:
            return t
    return seq_len


def _vmem_limit_bytes():
    try:
        phys = int(pltpu.get_tpu_info().vmem_capacity_bytes)
    except Exception:
        phys = 128 * 1024 * 1024
    # Headroom for compiler scratch & double buffering:
    # v7x (64 MiB) -> 48 MiB; v5e/v6e (128 MiB) -> 96-100 MiB.
    return min((phys * 3) // 4, 100 * 1024 * 1024)


def multi_head_self_attention(x, params, *, head_num,
                              heads_per_step=None, key_tile=None):
    """x: (B, S, H) float32; params: torch-layout wq,bq,wk,bk,wv,bv,wc (mask=None path)."""
    B, S, H = x.shape
    if H % head_num != 0:
        raise ValueError("hidden_size must be divisible by head_num")
    D = H // head_num

    if heads_per_step is None:
        heads_per_step = _choose_heads_per_step(head_num, D)
    if head_num % heads_per_step != 0:
        raise ValueError("head_num must be divisible by heads_per_step")
    GD = heads_per_step * D
    num_groups = head_num // heads_per_step

    if key_tile is None:
        key_tile = _choose_key_tile(S)
    if S % key_tile != 0:
        raise ValueError("sequence length must be divisible by key_tile")
    num_kt = S // key_tile

    # ---- one-time host-side packing: lane-dense, transpose-free in kernel ----
    def pack_w(w):      # torch (out, in) -> (groups, H, GD) so x @ W == x @ torch_W^T
        return jnp.transpose(w.T.reshape(H, num_groups, GD), (1, 0, 2))

    def pack_b(b):
        return b.reshape(num_groups, 1, GD).astype(jnp.float32)

    w_q = pack_w(params["wq"]).astype(jnp.bfloat16)
    b_q = pack_b(params["bq"])
    w_kv = jnp.concatenate([pack_w(params["wk"]), pack_w(params["wv"])],
                           axis=2).astype(jnp.bfloat16)                  # (G, H, 2GD)
    b_kv = jnp.concatenate([pack_b(params["bk"]), pack_b(params["bv"])], axis=2)
    w_c = params["wc"].T.reshape(num_groups, GD, H).astype(jnp.bfloat16)  # lane dim = H

    x_bf = x.astype(jnp.bfloat16)     # cast once at the boundary (halves x DMA)

    kernel = functools.partial(_mhsa_kernel, head_dim=D,
                               heads_per_step=heads_per_step, key_tile=key_tile)

    flops = B * (8 * S * H * H + 4 * S * S * H)
    transcendentals = B * head_num * S * S
    bytes_accessed = (B * S * H * 2              # x in (bf16)
                      + B * S * H * 4            # out (f32)
                      + B * (4 * H * H * 2       # bf16 weights, re-streamed per batch elem
                             + 3 * H * 4))       # f32 biases

    return pl.pallas_call(
        kernel,
        out_shape=jax.ShapeDtypeStruct((B, S, H), jnp.float32),
        grid_spec=pltpu.PrefetchScalarGridSpec(
            num_scalar_prefetch=0,
            grid=(B, num_groups, num_kt),        # batch | head group | key tile
            in_specs=[
                pl.BlockSpec((1, S, H), lambda b, g, k: (b, 0, 0)),        # x (resident)
                pl.BlockSpec((1, H, GD), lambda b, g, k: (g, 0, 0)),       # Wq group
                pl.BlockSpec((1, 1, GD), lambda b, g, k: (g, 0, 0)),       # bq group
                pl.BlockSpec((1, H, 2 * GD), lambda b, g, k: (g, 0, 0)),   # [Wk|Wv] group
                pl.BlockSpec((1, 1, 2 * GD), lambda b, g, k: (g, 0, 0)),   # [bk|bv] group
                pl.BlockSpec((1, GD, H), lambda b, g, k: (g, 0, 0)),       # Wc group
            ],
            out_specs=pl.BlockSpec((1, S, H), lambda b, g, k: (b, 0, 0)),  # resident output
            scratch_shapes=[
                pltpu.VMEM((S, GD), jnp.bfloat16),   # scaled q, reused across key tiles
                pltpu.VMEM((S, GD), jnp.float32),    # per-group weighted-value accumulator
            ],
        ),
        compiler_params=pltpu.CompilerParams(
            dimension_semantics=("parallel", "arbitrary", "arbitrary"),
            vmem_limit_bytes=_vmem_limit_bytes()),
        cost_estimate=pl.CostEstimate(
            flops=flops, transcendentals=transcendentals,
            bytes_accessed=bytes_accessed),
    )(x_bf, w_q, b_q, w_kv, b_kv, w_c)


def _reference(x, params, *, head_num):
    """Pure-JAX f32 reference mirroring the PyTorch forward (mask=None)."""
    H = x.shape[-1]
    D = H // head_num
    lin = lambda a, w, b: jnp.einsum("bsh,oh->bso", a, w) + b
    q = lin(x, params["wq"], params["bq"][0])
    k = lin(x, params["wk"], params["bk"][0])
    v = lin(x, params["wv"], params["bv"][0])
    split = lambda t: jnp.stack(jnp.split(t, head_num, axis=-1), axis=0)
    qs, ks, vs = split(q), split(k), split(v)
    dots = jnp.einsum("hbqd,hbkd->hbqk", qs, ks) / jnp.sqrt(jnp.float32(D))
    weights = jax.nn.softmax(dots, axis=2)               # dim=2 == query axis
    outs = jnp.einsum("hbqk,hbkd->hbqd", weights, vs)
    concat = jnp.concatenate([outs[i] for i in range(head_num)], axis=-1)
    return jnp.einsum("bsh,oh->bso", concat, params["wc"])


def init_params(key, hidden_size, initializer_range=0.02):
    ks = jax.random.split(key, 8)
    n = lambda k, shape, s: (jax.random.normal(k, shape, jnp.float32) * s)
    bound = 1.0 / math.sqrt(hidden_size)
    u = lambda k, shape: jax.random.uniform(k, shape, jnp.float32, -bound, bound)
    return {
        "wq": n(ks[0], (hidden_size, hidden_size), initializer_range),
        "bq": u(ks[1], (1, hidden_size)),
        "wk": n(ks[2], (hidden_size, hidden_size), initializer_range),
        "bk": u(ks[3], (1, hidden_size)),
        "wv": n(ks[4], (hidden_size, hidden_size), initializer_range),
        "bv": u(ks[5], (1, hidden_size)),
        "wc": n(ks[6], (hidden_size, hidden_size), initializer_range),
    }


if __name__ == "__main__":
    B, S, H = 2, 8, 32
    HEADS = 2

    key = jax.random.PRNGKey(0)
    k_x, k_p = jax.random.split(key)
    x = jax.random.normal(k_x, (B, S, H), jnp.float32)
    params = init_params(k_p, H)

    out = multi_head_self_attention(x, params, head_num=HEADS)
    out = jax.block_until_ready(out)

    ref = _reference(x, params, head_num=HEADS)
    assert out.shape == (B, S, H)
    # bf16 MXU operands (f32 accumulation) + approx reciprocal -> relaxed tolerance.
    assert jnp.allclose(out, ref, atol=1e-2, rtol=1e-2), "mismatch vs reference"

    print("KERNEL_OK")
</pallas_src>

<mosaic_0001>
module attributes {stable_mosaic.version = 11 : i64} {
  func.func @_mhsa_kernel(%arg0: i32, %arg1: i32, %arg2: i32, %arg3: memref<1x8x32xbf16, #tpu.memory_space<vmem>>, %arg4: memref<1x32x32xbf16, #tpu.memory_space<vmem>>, %arg5: memref<1x1x32xf32, #tpu.memory_space<vmem>>, %arg6: memref<1x32x64xbf16, #tpu.memory_space<vmem>>, %arg7: memref<1x1x64xf32, #tpu.memory_space<vmem>>, %arg8: memref<1x32x32xbf16, #tpu.memory_space<vmem>>, %arg9: memref<1x8x32xf32, #tpu.memory_space<vmem>>, %arg10: memref<8x32xbf16, #tpu.memory_space<vmem>>, %arg11: memref<8x32xf32, #tpu.memory_space<vmem>>) attributes {dimension_semantics = [#tpu.dimension_semantics<parallel>, #tpu.dimension_semantics<arbitrary>, #tpu.dimension_semantics<arbitrary>], iteration_bounds = array<i64: 2, 1, 1>, scalar_prefetch = 0 : i64, scratch_operands = 2 : i64, tpu.core_type = #tpu.core_type<tc>, window_params = [{transform_indices = @transform_0, window_bounds = array<i64: 1, 8, 32>}, {transform_indices = @transform_1, window_bounds = array<i64: 1, 32, 32>}, {transform_indices = @transform_2, window_bounds = array<i64: 1, 1, 32>}, {transform_indices = @transform_3, window_bounds = array<i64: 1, 32, 64>}, {transform_indices = @transform_4, window_bounds = array<i64: 1, 1, 64>}, {transform_indices = @transform_5, window_bounds = array<i64: 1, 32, 32>}, {transform_indices = @transform_6, window_bounds = array<i64: 1, 8, 32>}]} {
    %c0_i32 = arith.constant 0 : i32
    %0 = arith.cmpi eq, %arg1, %c0_i32 : i32
    %c0_i32_0 = arith.constant 0 : i32
    %1 = arith.cmpi eq, %arg2, %c0_i32_0 : i32
    %2 = arith.andi %0, %1 : i1
    %3 = arith.extui %2 : i1 to i32
    %c0_i32_1 = arith.constant 0 : i32
    %4 = arith.cmpi ne, %3, %c0_i32_1 : i32
    scf.if %4 {
      %cst_32 = arith.constant 0.000000e+00 : f32
      %65 = vector.broadcast %cst_32 : f32 to vector<1x8x32xf32>
      %c0_33 = arith.constant 0 : index
      %c0_34 = arith.constant 0 : index
      %c0_35 = arith.constant 0 : index
      %66 = vector.load %arg9[%c0_33, %c0_34, %c0_35] : memref<1x8x32xf32, #tpu.memory_space<vmem>>, vector<1x8x32xf32>
      tpu.vector_store %arg9[%c0_33, %c0_34, %c0_35], %65 {strides = array<i32>} : memref<1x8x32xf32, #tpu.memory_space<vmem>>, vector<1x8x32xf32>,
    } else {
    }
    %c0_i32_2 = arith.constant 0 : i32
    %5 = arith.cmpi eq, %arg2, %c0_i32_2 : i32
    %6 = arith.extui %5 : i1 to i32
    %c0_i32_3 = arith.constant 0 : i32
    %7 = arith.cmpi ne, %6, %c0_i32_3 : i32
    scf.if %7 {
      %c0_32 = arith.constant 0 : index
      %c0_33 = arith.constant 0 : index
      %c0_34 = arith.constant 0 : index
      %65 = vector.load %arg3[%c0_32, %c0_33, %c0_34] : memref<1x8x32xbf16, #tpu.memory_space<vmem>>, vector<1x8x32xbf16>
      %66 = vector.shape_cast %65 : vector<1x8x32xbf16> to vector<8x32xbf16>
      %c0_35 = arith.constant 0 : index
      %c0_36 = arith.constant 0 : index
      %c0_37 = arith.constant 0 : index
      %67 = vector.load %arg4[%c0_35, %c0_36, %c0_37] : memref<1x32x32xbf16, #tpu.memory_space<vmem>>, vector<1x32x32xbf16>
      %68 = vector.shape_cast %67 : vector<1x32x32xbf16> to vector<32x32xbf16>
      %cst_38 = arith.constant dense<0.000000e+00> : vector<8x32xf32>
      %69 = tpu.matmul %66, %68, %cst_38 {dimension_numbers = #tpu.dot_dimension_numbers<[1], [0], [0], [1], [0, 0, 1, 1], [], []>} : vector<8x32xbf16>, vector<32x32xbf16>, vector<8x32xf32> -> vector<8x32xf32>
      %c0_39 = arith.constant 0 : index
      %c0_40 = arith.constant 0 : index
      %c0_41 = arith.constant 0 : index
      %70 = vector.load %arg5[%c0_39, %c0_40, %c0_41] : memref<1x1x32xf32, #tpu.memory_space<vmem>>, vector<1x1x32xf32>
      %71 = vector.shape_cast %70 : vector<1x1x32xf32> to vector<1x32xf32>
      %72 = vector.broadcast %71 : vector<1x32xf32> to vector<8x32xf32>
      %73 = arith.addf %69, %72 : vector<8x32xf32>
      %cst_42 = arith.constant 2.500000e-01 : f32
      %74 = vector.broadcast %cst_42 : f32 to vector<8x32xf32>
      %75 = arith.mulf %73, %74 : vector<8x32xf32>
      %76 = arith.truncf %75 : vector<8x32xf32> to vector<8x32xbf16>
      %c0_43 = arith.constant 0 : index
      %c0_44 = arith.constant 0 : index
      %77 = vector.load %arg10[%c0_43, %c0_44] : memref<8x32xbf16, #tpu.memory_space<vmem>>, vector<8x32xbf16>
      tpu.vector_store %arg10[%c0_43, %c0_44], %76 {strides = array<i32>} : memref<8x32xbf16, #tpu.memory_space<vmem>>, vector<8x32xbf16>,
      %cst_45 = arith.constant 0.000000e+00 : f32
      %78 = vector.broadcast %cst_45 : f32 to vector<8x32xf32>
      %c0_46 = arith.constant 0 : index
      %c0_47 = arith.constant 0 : index
      %79 = vector.load %arg11[%c0_46, %c0_47] : memref<8x32xf32, #tpu.memory_space<vmem>>, vector<8x32xf32>
      tpu.vector_store %arg11[%c0_46, %c0_47], %78 {strides = array<i32>} : memref<8x32xf32, #tpu.memory_space<vmem>>, vector<8x32xf32>,
    } else {
    }
    %c8_i32 = arith.constant 8 : i32
    %8 = arith.muli %arg2, %c8_i32 : i32
    %9 = tpu.assume_multiple %8, 8 : i32
    %c0 = arith.constant 0 : index
    %10 = arith.index_cast %9 : i32 to index
    %c0_4 = arith.constant 0 : index
    %11 = vector.load %arg3[%c0, %10, %c0_4] : memref<1x8x32xbf16, #tpu.memory_space<vmem>>, vector<1x8x32xbf16>
    %12 = vector.shape_cast %11 : vector<1x8x32xbf16> to vector<8x32xbf16>
    %c0_5 = arith.constant 0 : index
    %c0_6 = arith.constant 0 : index
    %c0_7 = arith.constant 0 : index
    %13 = vector.load %arg6[%c0_5, %c0_6, %c0_7] : memref<1x32x64xbf16, #tpu.memory_space<vmem>>, vector<1x32x64xbf16>
    %14 = vector.shape_cast %13 : vector<1x32x64xbf16> to vector<32x64xbf16>
    %cst = arith.constant dense<0.000000e+00> : vector<8x64xf32>
    %15 = tpu.matmul %12, %14, %cst {dimension_numbers = #tpu.dot_dimension_numbers<[1], [0], [0], [1], [0, 0, 1, 1], [], []>} : vector<8x32xbf16>, vector<32x64xbf16>, vector<8x64xf32> -> vector<8x64xf32>
    %c0_8 = arith.constant 0 : index
    %c0_9 = arith.constant 0 : index
    %c0_10 = arith.constant 0 : index
    %16 = vector.load %arg7[%c0_8, %c0_9, %c0_10] : memref<1x1x64xf32, #tpu.memory_space<vmem>>, vector<1x1x64xf32>
    %17 = vector.shape_cast %16 : vector<1x1x64xf32> to vector<1x64xf32>
    %18 = vector.broadcast %17 : vector<1x64xf32> to vector<8x64xf32>
    %19 = arith.addf %15, %18 : vector<8x64xf32>
    %20 = vector.extract_strided_slice %19 {offsets = [0, 0], sizes = [8, 32], strides = [1, 1]} : vector<8x64xf32> to vector<8x32xf32>
    %21 = arith.truncf %20 : vector<8x32xf32> to vector<8x32xbf16>
    %22 = vector.extract_strided_slice %19 {offsets = [0, 32], sizes = [8, 32], strides = [1, 1]} : vector<8x64xf32> to vector<8x32xf32>
    %23 = arith.truncf %22 : vector<8x32xf32> to vector<8x32xbf16>
    %c0_11 = arith.constant 0 : index
    %c0_12 = arith.constant 0 : index
    %24 = vector.load %arg10[%c0_11, %c0_12] : memref<8x32xbf16, #tpu.memory_space<vmem>>, vector<8x16xbf16>
    %25 = vector.extract_strided_slice %21 {offsets = [0, 0], sizes = [8, 16], strides = [1, 1]} : vector<8x32xbf16> to vector<8x16xbf16>
    %cst_13 = arith.constant dense<0.000000e+00> : vector<8x8xf32>
    %26 = tpu.matmul %24, %25, %cst_13 {dimension_numbers = #tpu.dot_dimension_numbers<[1], [1], [0], [0], [0, 0, 1, 0], [], []>} : vector<8x16xbf16>, vector<8x16xbf16>, vector<8x8xf32> -> vector<8x8xf32>
    %cst_14 = arith.constant dense<0xFF800000> : vector<8xf32>
    %27 = vector.multi_reduction <maximumf>, %26, %cst_14 [0] : vector<8x8xf32> to vector<8xf32>
    %28 = vector.shape_cast %27 : vector<8xf32> to vector<1x8xf32>
    %29 = vector.broadcast %28 : vector<1x8xf32> to vector<8x8xf32>
    %30 = arith.subf %26, %29 : vector<8x8xf32>
    %31 = math.exp %30 : vector<8x8xf32>
    %cst_15 = arith.constant dense<0.000000e+00> : vector<8xf32>
    %32 = vector.multi_reduction <add>, %31, %cst_15 [0] : vector<8x8xf32> to vector<8xf32>
    %33 = vector.shape_cast %32 : vector<8xf32> to vector<1x8xf32>
    %34 = tpu.reciprocal %33 {approx = true} : vector<1x8xf32> -> vector<1x8xf32>
    %35 = vector.broadcast %34 : vector<1x8xf32> to vector<8x8xf32>
    %36 = arith.mulf %31, %35 : vector<8x8xf32>
    %c0_16 = arith.constant 0 : index
    %c0_17 = arith.constant 0 : index
    %37 = vector.load %arg11[%c0_16, %c0_17] : memref<8x32xf32, #tpu.memory_space<vmem>>, vector<8x16xf32>
    %38 = arith.truncf %36 : vector<8x8xf32> to vector<8x8xbf16>
    %39 = vector.extract_strided_slice %23 {offsets = [0, 0], sizes = [8, 16], strides = [1, 1]} : vector<8x32xbf16> to vector<8x16xbf16>
    %cst_18 = arith.constant dense<0.000000e+00> : vector<8x16xf32>
    %40 = tpu.matmul %38, %39, %cst_18 {dimension_numbers = #tpu.dot_dimension_numbers<[1], [0], [0], [1], [0, 0, 1, 1], [], []>} : vector<8x8xbf16>, vector<8x16xbf16>, vector<8x16xf32> -> vector<8x16xf32>
    %41 = arith.addf %37, %40 : vector<8x16xf32>
    %c0_19 = arith.constant 0 : index
    %c0_20 = arith.constant 0 : index
    %42 = vector.load %arg11[%c0_19, %c0_20] : memref<8x32xf32, #tpu.memory_space<vmem>>, vector<8x16xf32>
    tpu.vector_store %arg11[%c0_19, %c0_20], %41 {strides = array<i32>} : memref<8x32xf32, #tpu.memory_space<vmem>>, vector<8x16xf32>,
    %c0_21 = arith.constant 0 : index
    %c16 = arith.constant 16 : index
    %43 = vector.load %arg10[%c0_21, %c16] : memref<8x32xbf16, #tpu.memory_space<vmem>>, vector<8x16xbf16>
    %44 = vector.extract_strided_slice %21 {offsets = [0, 16], sizes = [8, 16], strides = [1, 1]} : vector<8x32xbf16> to vector<8x16xbf16>
    %cst_22 = arith.constant dense<0.000000e+00> : vector<8x8xf32>
    %45 = tpu.matmul %43, %44, %cst_22 {dimension_numbers = #tpu.dot_dimension_numbers<[1], [1], [0], [0], [0, 0, 1, 0], [], []>} : vector<8x16xbf16>, vector<8x16xbf16>, vector<8x8xf32> -> vector<8x8xf32>
    %cst_23 = arith.constant dense<0xFF800000> : vector<8xf32>
    %46 = vector.multi_reduction <maximumf>, %45, %cst_23 [0] : vector<8x8xf32> to vector<8xf32>
    %47 = vector.shape_cast %46 : vector<8xf32> to vector<1x8xf32>
    %48 = vector.broadcast %47 : vector<1x8xf32> to vector<8x8xf32>
    %49 = arith.subf %45, %48 : vector<8x8xf32>
    %50 = math.exp %49 : vector<8x8xf32>
    %cst_24 = arith.constant dense<0.000000e+00> : vector<8xf32>
    %51 = vector.multi_reduction <add>, %50, %cst_24 [0] : vector<8x8xf32> to vector<8xf32>
    %52 = vector.shape_cast %51 : vector<8xf32> to vector<1x8xf32>
    %53 = tpu.reciprocal %52 {approx = true} : vector<1x8xf32> -> vector<1x8xf32>
    %54 = vector.broadcast %53 : vector<1x8xf32> to vector<8x8xf32>
    %55 = arith.mulf %50, %54 : vector<8x8xf32>
    %c0_25 = arith.constant 0 : index
    %c16_26 = arith.constant 16 : index
    %56 = vector.load %arg11[%c0_25, %c16_26] : memref<8x32xf32, #tpu.memory_space<vmem>>, vector<8x16xf32>
    %57 = arith.truncf %55 : vector<8x8xf32> to vector<8x8xbf16>
    %58 = vector.extract_strided_slice %23 {offsets = [0, 16], sizes = [8, 16], strides = [1, 1]} : vector<8x32xbf16> to vector<8x16xbf16>
    %cst_27 = arith.constant dense<0.000000e+00> : vector<8x16xf32>
    %59 = tpu.matmul %57, %58, %cst_27 {dimension_numbers = #tpu.dot_dimension_numbers<[1], [0], [0], [1], [0, 0, 1, 1], [], []>} : vector<8x8xbf16>, vector<8x16xbf16>, vector<8x16xf32> -> vector<8x16xf32>
    %60 = arith.addf %56, %59 : vector<8x16xf32>
    %c0_28 = arith.constant 0 : index
    %c16_29 = arith.constant 16 : index
    %61 = vector.load %arg11[%c0_28, %c16_29] : memref<8x32xf32, #tpu.memory_space<vmem>>, vector<8x16xf32>
    tpu.vector_store %arg11[%c0_28, %c16_29], %60 {strides = array<i32>} : memref<8x32xf32, #tpu.memory_space<vmem>>, vector<8x16xf32>,
    %c0_i32_30 = arith.constant 0 : i32
    %62 = arith.cmpi eq, %arg2, %c0_i32_30 : i32
    %63 = arith.extui %62 : i1 to i32
    %c0_i32_31 = arith.constant 0 : i32
    %64 = arith.cmpi ne, %63, %c0_i32_31 : i32
    scf.if %64 {
      %c0_32 = arith.constant 0 : index
      %c0_33 = arith.constant 0 : index
      %65 = vector.load %arg11[%c0_32, %c0_33] : memref<8x32xf32, #tpu.memory_space<vmem>>, vector<8x32xf32>
      %66 = arith.truncf %65 : vector<8x32xf32> to vector<8x32xbf16>
      %c0_34 = arith.constant 0 : index
      %c0_35 = arith.constant 0 : index
      %c0_36 = arith.constant 0 : index
      %67 = vector.load %arg8[%c0_34, %c0_35, %c0_36] : memref<1x32x32xbf16, #tpu.memory_space<vmem>>, vector<1x32x32xbf16>
      %68 = vector.shape_cast %67 : vector<1x32x32xbf16> to vector<32x32xbf16>
      %cst_37 = arith.constant dense<0.000000e+00> : vector<8x32xf32>
      %69 = tpu.matmul %66, %68, %cst_37 {dimension_numbers = #tpu.dot_dimension_numbers<[1], [0], [0], [1], [0, 0, 1, 1], [], []>} : vector<8x32xbf16>, vector<32x32xbf16>, vector<8x32xf32> -> vector<8x32xf32>
      %c0_38 = arith.constant 0 : index
      %c0_39 = arith.constant 0 : index
      %c0_40 = arith.constant 0 : index
      %70 = vector.load %arg9[%c0_38, %c0_39, %c0_40] : memref<1x8x32xf32, #tpu.memory_space<vmem>>, vector<1x8x32xf32>
      %71 = vector.shape_cast %70 : vector<1x8x32xf32> to vector<8x32xf32>
      %72 = arith.addf %71, %69 : vector<8x32xf32>
      %c0_41 = arith.constant 0 : index
      %c0_42 = arith.constant 0 : index
      %c0_43 = arith.constant 0 : index
      %73 = vector.load %arg9[%c0_41, %c0_42, %c0_43] : memref<1x8x32xf32, #tpu.memory_space<vmem>>, vector<1x8x32xf32>
      %74 = vector.shape_cast %73 : vector<1x8x32xf32> to vector<8x32xf32>
      %75 = vector.shape_cast %72 : vector<8x32xf32> to vector<1x8x32xf32>
      tpu.vector_store %arg9[%c0_41, %c0_42, %c0_43], %75 {strides = array<i32>} : memref<1x8x32xf32, #tpu.memory_space<vmem>>, vector<1x8x32xf32>,
    } else {
    }
    return
  }
  func.func @transform_0(%arg0: i32, %arg1: i32, %arg2: i32) -> (i32, i32, i32) {
    %c0_i32 = arith.constant 0 : i32
    %c0_i32_0 = arith.constant 0 : i32
    %c0_i32_1 = arith.constant 0 : i32
    return %arg0, %c0_i32, %c0_i32_0 : i32, i32, i32
  }
  func.func @transform_1(%arg0: i32, %arg1: i32, %arg2: i32) -> (i32, i32, i32) {
    %c0_i32 = arith.constant 0 : i32
    %c0_i32_0 = arith.constant 0 : i32
    %c0_i32_1 = arith.constant 0 : i32
    return %arg1, %c0_i32, %c0_i32_0 : i32, i32, i32
  }
  func.func @transform_2(%arg0: i32, %arg1: i32, %arg2: i32) -> (i32, i32, i32) {
    %c0_i32 = arith.constant 0 : i32
    %c0_i32_0 = arith.constant 0 : i32
    %c0_i32_1 = arith.constant 0 : i32
    return %arg1, %c0_i32, %c0_i32_0 : i32, i32, i32
  }
  func.func @transform_3(%arg0: i32, %arg1: i32, %arg2: i32) -> (i32, i32, i32) {
    %c0_i32 = arith.constant 0 : i32
    %c0_i32_0 = arith.constant 0 : i32
    %c0_i32_1 = arith.constant 0 : i32
    return %arg1, %c0_i32, %c0_i32_0 : i32, i32, i32
  }
  func.func @transform_4(%arg0: i32, %arg1: i32, %arg2: i32) -> (i32, i32, i32) {
    %c0_i32 = arith.constant 0 : i32
    %c0_i32_0 = arith.constant 0 : i32
    %c0_i32_1 = arith.constant 0 : i32
    return %arg1, %c0_i32, %c0_i32_0 : i32, i32, i32
  }
  func.func @transform_5(%arg0: i32, %arg1: i32, %arg2: i32) -> (i32, i32, i32) {
    %c0_i32 = arith.constant 0 : i32
    %c0_i32_0 = arith.constant 0 : i32
    %c0_i32_1 = arith.constant 0 : i32
    return %arg1, %c0_i32, %c0_i32_0 : i32, i32, i32
  }
  func.func @transform_6(%arg0: i32, %arg1: i32, %arg2: i32) -> (i32, i32, i32) {
    %c0_i32 = arith.constant 0 : i32
    %c0_i32_0 = arith.constant 0 : i32
    %c0_i32_1 = arith.constant 0 : i32
    return %arg0, %c0_i32, %c0_i32_0 : i32, i32, i32
  }
}

</mosaic_0001>

<llo_original>
// kernel: tpu_custom_call.1
$region0: #{tpu_custom_call.1}
  #allocation0 [shape = 'u32[]', space=smem, size = 0x4, offset = 0x4, fixed_abs, tag = 'smem constant byte address 0x4 - core index']
  #allocation1 [shape = 'u32[144,128]{1,0:T(1,128)}', space=vmem, size = 0x12000, scoped, tag = 'internal scratch']
  #allocation2 [shape = 'bf16[8,32]{1,0:T(8,128)(2,1)}', space=vmem, size = 0x800, scoped, tag = 'scratch operand']
  #allocation3 [shape = 'f32[8,32]{1,0:T(8,128)}', space=vmem, size = 0x1000, scoped, tag = 'scratch operand']
  %s0 = inlined_call_operand.hbm [shape: bf16[2,8,32], index: 0, kind: input, shape index: {}]
  %s1 = inlined_call_operand.hbm [shape: bf16[1,32,32], index: 1, kind: input, shape index: {}]
  %s2 = inlined_call_operand.hbm [shape: f32[1,1,32], index: 2, kind: input, shape index: {}]
  %s3 = inlined_call_operand.hbm [shape: bf16[1,32,64], index: 3, kind: input, shape index: {}]
  %s4 = inlined_call_operand.hbm [shape: f32[1,1,64], index: 4, kind: input, shape index: {}]
  %s5 = inlined_call_operand.hbm [shape: bf16[1,32,32], index: 5, kind: input, shape index: {}]
  %s6 = inlined_call_operand.hbm [shape: f32[2,8,32], index: 6, kind: output, shape index: {}]
  %s7 = sld [smem:[#allocation0]]
  $region93: #{tpu_custom_call.1} parent=0
    _
  %s9 = ssub.s32 1, %s7
  %s10 = scalar_select 0, %s9, %s7
  $region1: #{tpu_custom_call.1} parent=0
    #allocation4 [shape = 'u8[4096]{0}', space=vmem, size = 0x1000, scoped, tag = 'input window, operand 0']
    #allocation5 [shape = 's32[2]{0}', space=sflag, size = 0x8, scoped, tag = 'scoped memory for tpu_custom_call.1']
    #allocation6 [shape = 's32[2]{0}', space=sflag, size = 0x8, scoped, tag = 'scoped memory for tpu_custom_call.1']
    #allocation7 [shape = 'u8[8192]{0}', space=vmem, size = 0x2000, scoped, tag = 'input window, operand 1, single buffered']
    #allocation8 [shape = 's32[1]{0}', space=sflag, size = 0x4, scoped, tag = 'scoped memory for tpu_custom_call.1']
    #allocation9 [shape = 'u8[512]{0}', space=vmem, size = 0x400, scoped, tag = 'input window, operand 2, single buffered']
    #allocation10 [shape = 'u8[8192]{0}', space=vmem, size = 0x2000, scoped, tag = 'input window, operand 3, single buffered']
    #allocation11 [shape = 's32[1]{0}', space=sflag, size = 0x4, scoped, tag = 'scoped memory for tpu_custom_call.1']
    #allocation12 [shape = 'u8[512]{0}', space=vmem, size = 0x400, scoped, tag = 'input window, operand 4, single buffered']
    #allocation13 [shape = 'u8[8192]{0}', space=vmem, size = 0x2000, scoped, tag = 'input window, operand 5, single buffered']
    #allocation14 [shape = 's32[1]{0}', space=sflag, size = 0x4, scoped, tag = 'scoped memory for tpu_custom_call.1']
    #allocation15 [shape = 'u8[8192]{0}', space=vmem, size = 0x2000, scoped, tag = 'output window, operand 0']
    %11 = vsyncpa [#allocation5], 0
    %s12 = scalar_lea.sflag [#allocation5], 1
    %13 = vsyncpa %s12, 0
    %14 = vsyncpa [#allocation8], 0
    %15 = vsyncpa [#allocation11], 0
    %16 = vsyncpa [#allocation14], 0
    %17 = vsyncpa [#allocation6], 0
    %s18 = scalar_lea.sflag [#allocation6], 1
    %19 = vsyncpa %s18, 0
    loop: start=0, step=1, limit=4
    $region2: #{tpu_custom_call.1} parent=1 // loop_pre_header
      _
    $region3: #{tpu_custom_call.1} parent=1 // loop_header
      %s21 = sphi 0, %s25
      %p22 = scmp.ge.s32.totalorder %s21, 4
      %s28 = sphi 0, %s47
      %s29 = sphi 0, %s43
      %s30 = sphi 0, %s39
      %s31 = sphi 0, %s28
      %s32 = sphi 0, %s29
      %s33 = sphi 0, %s30
      %s34 = sphi 0, %s31
      %s35 = sphi 0, %s32
      %s36 = sphi 0, %s33
      %s50 = sphi 0, %s52
      %s53 = sphi 0, %s50
      %s54 = sphi 0, %s53
      %s70 = sphi 0, %s54
      %s76 = sphi 0, %s78
      %s79 = sphi 0, %s76
      %s80 = sphi 0, %s79
      %s96 = sphi 0, %s80
      %s102 = sphi 0, %s104
      %s105 = sphi 0, %s102
      %s106 = sphi 0, %s105
      %s122 = sphi 0, %s106
      %s128 = sphi 0, %s130
      %s131 = sphi 0, %s128
      %s132 = sphi 0, %s131
      %s148 = sphi 0, %s132
      %s154 = sphi 0, %s156
      %s157 = sphi 0, %s154
      %s158 = sphi 0, %s157
      %s174 = sphi 0, %s158
      %s180 = sphi 0, %s182
      %s183 = sphi 0, %s180
      %s184 = sphi 0, %s183
      %s200 = sphi 0, %s184
      %s206 = sphi 0, %s208
      %s209 = sphi 0, %s206
      %s210 = sphi 0, %s209
      %s226 = sphi 0, %s210
    $region4: #{tpu_custom_call.1} parent=1 // loop_header_branch
      %24 = sbr.rel (%p22) target = $region8
    $region5: #{tpu_custom_call.1} parent=1 // loop_body
      %s26 = ssub.s32 %s21, 1
      %s27 = ssub.s32 %s21, 2
      %s37 = sadd.s32 1, %s30
      %p38 = scmp.ge.s32.totalorder %s37, 1
      %s39 = scalar_select %p38, 0, %s37
      %s40 = sadd.s32 1, %s29
      %s41 = scalar_select %p38, %s40, %s29
      %p42 = scmp.ge.s32.totalorder %s41, 1
      %s43 = scalar_select %p42, 0, %s41
      %s44 = sadd.s32 1, %s28
      %s45 = scalar_select %p42, %s44, %s28
      %p46 = scmp.ge.s32.totalorder %s45, 2
      %s47 = scalar_select %p46, 0, %s45
      %s48 = ssub.s32 %s28, %s47
      %p49 = scmp.eq.s32.totalorder %s48, 0
      %s51 = sadd.s32 %s50, 1
      %s52 = scalar_select %p49, %s50, %s51
      %p55 = pneg %p49
      %p56 = scmp.eq.s32.totalorder %s21, 1
      %p57 = por %p55, %p56
      %p58 = scmp.ne.s32.totalorder %s50, %s53
      %p59 = scmp.eq.s32.totalorder %s21, 0
      %p60 = por %p58, %p59
      %p61 = scmp.ne.s32.totalorder %s50, %s53
      %p62 = scmp.eq.s32.totalorder %s26, 1
      %p63 = por %p61, %p62
      %p64 = scmp.ne.s32.totalorder %s53, %s54
      %p65 = scmp.eq.s32.totalorder %s26, 0
      %p66 = por %p64, %p65
      %p67 = scmp.ne.s32.totalorder %s53, %s54
      %p68 = scmp.eq.s32.totalorder %s27, 1
      %p69 = por %p67, %p68
      %p71 = scmp.ne.s32.totalorder %s54, %s70
      %p72 = scmp.eq.s32.totalorder %s27, 0
      %p73 = por %p71, %p72
      %s74 = ssub.s32 %s29, %s43
      %p75 = scmp.eq.s32.totalorder %s74, 0
      %s77 = sadd.s32 %s76, 1
      %s78 = scalar_select %p75, %s76, %s77
      %p81 = pneg %p75
      %p82 = scmp.eq.s32.totalorder %s21, 1
      %p83 = por %p81, %p82
      %p84 = scmp.ne.s32.totalorder %s76, %s79
      %p85 = scmp.eq.s32.totalorder %s21, 0
      %p86 = por %p84, %p85
      %p87 = scmp.ne.s32.totalorder %s76, %s79
      %p88 = scmp.eq.s32.totalorder %s26, 1
      %p89 = por %p87, %p88
      %p90 = scmp.ne.s32.totalorder %s79, %s80
      %p91 = scmp.eq.s32.totalorder %s26, 0
      %p92 = por %p90, %p91
      %p93 = scmp.ne.s32.totalorder %s79, %s80
      %p94 = scmp.eq.s32.totalorder %s27, 1
      %p95 = por %p93, %p94
      %p97 = scmp.ne.s32.totalorder %s80, %s96
      %p98 = scmp.eq.s32.totalorder %s27, 0
      %p99 = por %p97, %p98
      %s100 = ssub.s32 %s29, %s43
      %p101 = scmp.eq.s32.totalorder %s100, 0
      %s103 = sadd.s32 %s102, 1
      %s104 = scalar_select %p101, %s102, %s103
      %p107 = pneg %p101
      %p108 = scmp.eq.s32.totalorder %s21, 1
      %p109 = por %p107, %p108
      %p110 = scmp.ne.s32.totalorder %s102, %s105
      %p111 = scmp.eq.s32.totalorder %s21, 0
      %p112 = por %p110, %p111
      %p113 = scmp.ne.s32.totalorder %s102, %s105
      %p114 = scmp.eq.s32.totalorder %s26, 1
      %p115 = por %p113, %p114
      %p116 = scmp.ne.s32.totalorder %s105, %s106
      %p117 = scmp.eq.s32.totalorder %s26, 0
      %p118 = por %p116, %p117
      %p119 = scmp.ne.s32.totalorder %s105, %s106
      %p120 = scmp.eq.s32.totalorder %s27, 1
      %p121 = por %p119, %p120
      %p123 = scmp.ne.s32.totalorder %s106, %s122
      %p124 = scmp.eq.s32.totalorder %s27, 0
      %p125 = por %p123, %p124
      %s126 = ssub.s32 %s29, %s43
      %p127 = scmp.eq.s32.totalorder %s126, 0
      %s129 = sadd.s32 %s128, 1
      %s130 = scalar_select %p127, %s128, %s129
      %p133 = pneg %p127
      %p134 = scmp.eq.s32.totalorder %s21, 1
      %p135 = por %p133, %p134
      %p136 = scmp.ne.s32.totalorder %s128, %s131
      %p137 = scmp.eq.s32.totalorder %s21, 0
      %p138 = por %p136, %p137
      %p139 = scmp.ne.s32.totalorder %s128, %s131
      %p140 = scmp.eq.s32.totalorder %s26, 1
      %p141 = por %p139, %p140
      %p142 = scmp.ne.s32.totalorder %s131, %s132
      %p143 = scmp.eq.s32.totalorder %s26, 0
      %p144 = por %p142, %p143
      %p145 = scmp.ne.s32.totalorder %s131, %s132
      %p146 = scmp.eq.s32.totalorder %s27, 1
      %p147 = por %p145, %p146
      %p149 = scmp.ne.s32.totalorder %s132, %s148
      %p150 = scmp.eq.s32.totalorder %s27, 0
      %p151 = por %p149, %p150
      %s152 = ssub.s32 %s29, %s43
      %p153 = scmp.eq.s32.totalorder %s152, 0
      %s155 = sadd.s32 %s154, 1
      %s156 = scalar_select %p153, %s154, %s155
      %p159 = pneg %p153
      %p160 = scmp.eq.s32.totalorder %s21, 1
      %p161 = por %p159, %p160
      %p162 = scmp.ne.s32.totalorder %s154, %s157
      %p163 = scmp.eq.s32.totalorder %s21, 0
      %p164 = por %p162, %p163
      %p165 = scmp.ne.s32.totalorder %s154, %s157
      %p166 = scmp.eq.s32.totalorder %s26, 1
      %p167 = por %p165, %p166
      %p168 = scmp.ne.s32.totalorder %s157, %s158
      %p169 = scmp.eq.s32.totalorder %s26, 0
      %p170 = por %p168, %p169
      %p171 = scmp.ne.s32.totalorder %s157, %s158
      %p172 = scmp.eq.s32.totalorder %s27, 1
      %p173 = por %p171, %p172
      %p175 = scmp.ne.s32.totalorder %s158, %s174
      %p176 = scmp.eq.s32.totalorder %s27, 0
      %p177 = por %p175, %p176
      %s178 = ssub.s32 %s29, %s43
      %p179 = scmp.eq.s32.totalorder %s178, 0
      %s181 = sadd.s32 %s180, 1
      %s182 = scalar_select %p179, %s180, %s181
      %p185 = pneg %p179
      %p186 = scmp.eq.s32.totalorder %s21, 1
      %p187 = por %p185, %p186
      %p188 = scmp.ne.s32.totalorder %s180, %s183
      %p189 = scmp.eq.s32.totalorder %s21, 0
      %p190 = por %p188, %p189
      %p191 = scmp.ne.s32.totalorder %s180, %s183
      %p192 = scmp.eq.s32.totalorder %s26, 1
      %p193 = por %p191, %p192
      %p194 = scmp.ne.s32.totalorder %s183, %s184
      %p195 = scmp.eq.s32.totalorder %s26, 0
      %p196 = por %p194, %p195
      %p197 = scmp.ne.s32.totalorder %s183, %s184
      %p198 = scmp.eq.s32.totalorder %s27, 1
      %p199 = por %p197, %p198
      %p201 = scmp.ne.s32.totalorder %s184, %s200
      %p202 = scmp.eq.s32.totalorder %s27, 0
      %p203 = por %p201, %p202
      %s204 = ssub.s32 %s28, %s47
      %p205 = scmp.eq.s32.totalorder %s204, 0
      %s207 = sadd.s32 %s206, 1
      %s208 = scalar_select %p205, %s206, %s207
      %p211 = pneg %p205
      %p212 = scmp.eq.s32.totalorder %s21, 1
      %p213 = por %p211, %p212
      %p214 = scmp.ne.s32.totalorder %s206, %s209
      %p215 = scmp.eq.s32.totalorder %s21, 0
      %p216 = por %p214, %p215
      %p217 = scmp.ne.s32.totalorder %s206, %s209
      %p218 = scmp.eq.s32.totalorder %s26, 1
      %p219 = por %p217, %p218
      %p220 = scmp.ne.s32.totalorder %s209, %s210
      %p221 = scmp.eq.s32.totalorder %s26, 0
      %p222 = por %p220, %p221
      %p223 = scmp.ne.s32.totalorder %s209, %s210
      %p224 = scmp.eq.s32.totalorder %s27, 1
      %p225 = por %p223, %p224
      %p227 = scmp.ne.s32.totalorder %s210, %s226
      %p228 = scmp.eq.s32.totalorder %s27, 0
      %p229 = por %p227, %p228
      %p230 = scmp.le.s32.totalorder 1, %s21
      %p231 = scmp.lt.s32.totalorder %s21, 3
      %p232 = pnand %p230, %p231
      %p233 = pneg %p232
      // Predicated region
      $region9: #{tpu_custom_call.1} parent=5 // pred_check
        _
      $region10: #{tpu_custom_call.1} parent=5 // pred_check_branch
        %235 = sbr.rel (%p232) target = $region12
      $region11: #{tpu_custom_call.1} parent=5 // pred_region
        %s236 = ssub.s32 %s21, 1
        // Predicated region
        $region13: #{tpu_custom_call.1} parent=11 // pred_check
          %p237 = pneg %p92
        $region14: #{tpu_custom_call.1} parent=11 // pred_check_branch
          %239 = sbr.rel (%p237) target = $region16
        $region15: #{tpu_custom_call.1} parent=11 // pred_region
          %s241 = ssub.s32 256, 256
          %242 = vsyncadd [#allocation8], %s241
          %s243 = smul.addr %s32, 4
          %s244 = smul.addr %s243, 64
          %s245 = scalar_lea.hbm %s1, %s244
          %s246 = sshll.u32 [#allocation7], 4
          %s247 = int_to_ptr.vmem [resolvable:$true] %s246
          %252 = dma.hbm_to_vmem [thread:$0]  %s245, 256, %s247, [#allocation8], 64, 64, 4
        $region16: #{tpu_custom_call.1} parent=11 // pred_fallthru
          _
        // Predicated region
        $region17: #{tpu_custom_call.1} parent=11 // pred_check
          %p253 = pneg %p118
        $region18: #{tpu_custom_call.1} parent=11 // pred_check_branch
          %255 = sbr.rel (%p253) target = $region20
        $region19: #{tpu_custom_call.1} parent=11 // pred_region
          %s257 = ssub.s32 16, 16
          %258 = vsyncadd [#allocation8], %s257
          %s259 = smul.addr %s32, 16
          %s260 = scalar_lea.hbm %s2, %s259
          %s262 = sshll.u32 [#allocation9], 4
          %s263 = int_to_ptr.vmem [resolvable:$true] %s262
          %265 = dma.hbm_to_vmem [thread:$0]  %s260, 16, %s263, [#allocation8]
        $region20: #{tpu_custom_call.1} parent=11 // pred_fallthru
          _
        // Predicated region
        $region21: #{tpu_custom_call.1} parent=11 // pred_check
          %p266 = pneg %p144
        $region22: #{tpu_custom_call.1} parent=11 // pred_check_branch
          %268 = sbr.rel (%p266) target = $region24
        $region23: #{tpu_custom_call.1} parent=11 // pred_region
          %s270 = ssub.s32 256, 256
          %271 = vsyncadd [#allocation11], %s270
          %s272 = smul.addr %s32, 4
          %s273 = smul.addr %s272, 64
          %s274 = scalar_lea.hbm %s3, %s273
          %s275 = sshll.u32 [#allocation10], 4
          %s276 = int_to_ptr.vmem [resolvable:$true] %s275
          %281 = dma.hbm_to_vmem [thread:$0]  %s274, 256, %s276, [#allocation11], 64, 64, 4
        $region24: #{tpu_custom_call.1} parent=11 // pred_fallthru
          _
        // Predicated region
        $region25: #{tpu_custom_call.1} parent=11 // pred_check
          %p282 = pneg %p170
        $region26: #{tpu_custom_call.1} parent=11 // pred_check_branch
          %284 = sbr.rel (%p282) target = $region28
        $region27: #{tpu_custom_call.1} parent=11 // pred_region
          %s286 = ssub.s32 16, 16
          %287 = vsyncadd [#allocation11], %s286
          %s288 = smul.addr %s32, 16
          %s289 = scalar_lea.hbm %s4, %s288
          %s291 = sshll.u32 [#allocation12], 4
          %s292 = int_to_ptr.vmem [resolvable:$true] %s291
          %294 = dma.hbm_to_vmem [thread:$0]  %s289, 16, %s292, [#allocation11]
        $region28: #{tpu_custom_call.1} parent=11 // pred_fallthru
          _
        // Predicated region
        $region29: #{tpu_custom_call.1} parent=11 // pred_check
          %p295 = pneg %p196
        $region30: #{tpu_custom_call.1} parent=11 // pred_check_branch
          %297 = sbr.rel (%p295) target = $region32
        $region31: #{tpu_custom_call.1} parent=11 // pred_region
          %s299 = ssub.s32 256, 256
          %300 = vsyncadd [#allocation14], %s299
          %s301 = smul.addr %s32, 4
          %s302 = smul.addr %s301, 64
          %s303 = scalar_lea.hbm %s5, %s302
          %s304 = sshll.u32 [#allocation13], 4
          %s305 = int_to_ptr.vmem [resolvable:$true] %s304
          %310 = dma.hbm_to_vmem [thread:$0]  %s303, 256, %s305, [#allocation14], 64, 64, 4
        $region32: #{tpu_custom_call.1} parent=11 // pred_fallthru
          _
      $region12: #{tpu_custom_call.1} parent=5 // pred_fallthru
        _
      %p311 = scmp.lt.s32.totalorder %s21, 2
      // Predicated region
      $region33: #{tpu_custom_call.1} parent=5 // pred_check
        %p312 = pneg %p311
      $region34: #{tpu_custom_call.1} parent=5 // pred_check_branch
        %314 = sbr.rel (%p312) target = $region36
      $region35: #{tpu_custom_call.1} parent=5 // pred_region
        // Predicated region
        $region37: #{tpu_custom_call.1} parent=35 // pred_check
          %p315 = pneg %p60
        $region38: #{tpu_custom_call.1} parent=35 // pred_check_branch
          %317 = sbr.rel (%p315) target = $region40
        $region39: #{tpu_custom_call.1} parent=35 // pred_region
          %s318 = sand.u32 %s50, 1
          %s319 = scalar_lea.sflag [#allocation5], %s318
          %s320 = sand.u32 %s50, 1
          %s321 = smul.addr %s320, 4
          %s322 = scalar_lea.vmem [#allocation4], %s321
          %s324 = ssub.s32 64, 64
          %325 = vsyncadd %s319, %s324
          %s326 = smul.addr %s28, 64
          %s327 = scalar_lea.hbm %s0, %s326
          %s329 = sshll.u32 %s322, 4
          %s330 = int_to_ptr.vmem [resolvable:$true] %s329
          %332 = dma.hbm_to_vmem [thread:$0]  %s327, 64, %s330, %s319
        $region40: #{tpu_custom_call.1} parent=35 // pred_fallthru
          _
      $region36: #{tpu_custom_call.1} parent=5 // pred_fallthru
        _
      %p333 = scmp.le.s32.totalorder 1, %s21
      %p334 = scmp.lt.s32.totalorder %s21, 3
      %p335 = pnand %p333, %p334
      %p336 = pneg %p335
      // Predicated region
      $region41: #{tpu_custom_call.1} parent=5 // pred_check
        _
      $region42: #{tpu_custom_call.1} parent=5 // pred_check_branch
        %338 = sbr.rel (%p335) target = $region44
      $region43: #{tpu_custom_call.1} parent=5 // pred_region
        %s339 = ssub.s32 %s21, 1
        %s340 = sand.u32 %s53, 1
        %s341 = scalar_lea.sflag [#allocation5], %s340
        %s342 = sand.u32 %s53, 1
        %s343 = smul.addr %s342, 4
        %s344 = scalar_lea.vmem [#allocation4], %s343
        // Predicated region
        $region45: #{tpu_custom_call.1} parent=43 // pred_check
          %p345 = pneg %p66
        $region46: #{tpu_custom_call.1} parent=43 // pred_check_branch
          %347 = sbr.rel (%p345) target = $region48
        $region47: #{tpu_custom_call.1} parent=43 // pred_region
          %348 = dma.done %s341, 64
        $region48: #{tpu_custom_call.1} parent=43 // pred_fallthru
          _
        // Predicated region
        $region49: #{tpu_custom_call.1} parent=43 // pred_check
          %p349 = pneg %p92
        $region50: #{tpu_custom_call.1} parent=43 // pred_check_branch
          %351 = sbr.rel (%p349) target = $region52
        $region51: #{tpu_custom_call.1} parent=43 // pred_region
          %352 = dma.done [#allocation8], 256
        $region52: #{tpu_custom_call.1} parent=43 // pred_fallthru
          _
        // Predicated region
        $region53: #{tpu_custom_call.1} parent=43 // pred_check
          %p353 = pneg %p118
        $region54: #{tpu_custom_call.1} parent=43 // pred_check_branch
          %355 = sbr.rel (%p353) target = $region56
        $region55: #{tpu_custom_call.1} parent=43 // pred_region
          %356 = dma.done [#allocation8], 16
        $region56: #{tpu_custom_call.1} parent=43 // pred_fallthru
          _
        // Predicated region
        $region57: #{tpu_custom_call.1} parent=43 // pred_check
          %p357 = pneg %p144
        $region58: #{tpu_custom_call.1} parent=43 // pred_check_branch
          %359 = sbr.rel (%p357) target = $region60
        $region59: #{tpu_custom_call.1} parent=43 // pred_region
          %360 = dma.done [#allocation11], 256
        $region60: #{tpu_custom_call.1} parent=43 // pred_fallthru
          _
        // Predicated region
        $region61: #{tpu_custom_call.1} parent=43 // pred_check
          %p361 = pneg %p170
        $region62: #{tpu_custom_call.1} parent=43 // pred_check_branch
          %363 = sbr.rel (%p361) target = $region64
        $region63: #{tpu_custom_call.1} parent=43 // pred_region
          %364 = dma.done [#allocation11], 16
        $region64: #{tpu_custom_call.1} parent=43 // pred_fallthru
          _
        // Predicated region
        $region65: #{tpu_custom_call.1} parent=43 // pred_check
          %p365 = pneg %p196
        $region66: #{tpu_custom_call.1} parent=43 // pred_check_branch
          %367 = sbr.rel (%p365) target = $region68
        $region67: #{tpu_custom_call.1} parent=43 // pred_region
          %368 = dma.done [#allocation14], 256
        $region68: #{tpu_custom_call.1} parent=43 // pred_fallthru
          _
        %s369 = sand.u32 %s53, 1
        %s370 = scalar_lea.sflag [#allocation5], %s369
        %s371 = sand.u32 %s53, 1
        %s372 = smul.addr %s371, 4
        %s373 = scalar_lea.vmem [#allocation4], %s372
        %p374 = pneg %p66
        %p375 = pneg %p63
        %p376 = pneg %p92
        %p377 = pneg %p89
        %p378 = pneg %p118
        %p379 = pneg %p115
        %p380 = pneg %p144
        %p381 = pneg %p141
        %p382 = pneg %p170
        %p383 = pneg %p167
        %p384 = pneg %p196
        %p385 = pneg %p193
        %p386 = pneg %p222
        %p387 = pneg %p219
        %s388 = sand.u32 %s209, 1
        %s389 = scalar_lea.sflag [#allocation6], %s388
        %s390 = sand.u32 %s209, 1
        %s391 = smul.addr %s390, 8
        %s392 = scalar_lea.vmem [#allocation15], %s391
        %p394 = scmp.eq.s32.totalorder %s32, 0
        %p395 = scmp.eq.s32.totalorder %s33, 0
        %p396 = pnand %p394, %p395
        %p397 = pneg %p396
        // Predicated region
        $region69: #{tpu_custom_call.1} parent=43 // pred_check
          _
        $region70: #{tpu_custom_call.1} parent=43 // pred_check_branch
          %399 = sbr.rel (%p396) target = $region72
        $region71: #{tpu_custom_call.1} parent=43 // pred_region
          %vm400 = vcmask 261120
          %401 = vst.msk [vmem:[%s392] sm:$0xff] %vm400, 0.0
        $region72: #{tpu_custom_call.1} parent=43 // pred_fallthru
          _
        // Predicated region
        $region73: #{tpu_custom_call.1} parent=43 // pred_check
          %p402 = pneg %p395
        $region74: #{tpu_custom_call.1} parent=43 // pred_check_branch
          %404 = sbr.rel (%p402) target = $region76
        $region75: #{tpu_custom_call.1} parent=43 // pred_region
          %v405 = vld [vmem:[%s344] sm:$0xf]
          %v406 = vld [vmem:[#allocation7] sm:$0xf]
          %v407 = vld [vmem:[#allocation7 + $0x4] sm:$0xf]
          %v408 = vld [vmem:[#allocation7 + $0x8] sm:$0xf]
          %v409 = vld [vmem:[#allocation7 + $0xc] sm:$0xf]
          %v410 = vld [vmem:[#allocation9] sm:$0x1]
          %v412 = vlaneseq
          %v413 = vshrl.u32 %v412, 7
          %v414 = vsub.s32 0, %v413
          %v415 = vrot.slane %v410, %v414
          %v421 = vunpack.c.l.b16 %v406
          %v422 = vunpack.c.l.b16 %v407
          %v423 = vunpack.c.l.b16 %v408
          %v424 = vunpack.c.l.b16 %v409
          %v425 = vpack.c.b16 %v422, %v421
          %v426 = vpack.c.b16 %v424, %v423
          %vm429 = vcmask 261120
          %v431 = vsel %vm429, %v405, 0
          %433 = vmatprep.subr.bf16.mxu0 0
          %434 = vmatpush1.bf16.msra.mxu0 %v425
          %435 = vmatprep.subr.bf16.mxu0 0
          %436 = vmatpush1.bf16.msra.mxu0 %v426
          %437 = vmatprep.subr.bf16.mxu0 0
          %438 = vmatpush1.bf16.msra.mxu0 0
          %439 = vmatprep.subr.bf16.mxu0 0
          %440 = vmatpush1.bf16.msra.mxu0 0
          %441 = vmatprep.subr.bf16.mxu0 0
          %442 = vmatpush1.bf16.msra.mxu0 0
          %443 = vmatprep.subr.bf16.mxu0 0
          %444 = vmatpush1.bf16.msra.mxu0 0
          %445 = vmatprep.subr.bf16.mxu0 0
          %446 = vmatpush1.bf16.msra.mxu0 0
          %447 = vmatprep.subr.bf16.mxu0 0
          %448 = vmatpush1.bf16.msra.mxu0 0
          %449 = vmatprep.subr.bf16.mxu0 0
          %450 = vmatpush1.bf16.msra.mxu0 0
          %451 = vmatprep.subr.bf16.mxu0 0
          %452 = vmatpush1.bf16.msra.mxu0 0
          %453 = vmatprep.subr.bf16.mxu0 0
          %454 = vmatpush1.bf16.msra.mxu0 0
          %455 = vmatprep.subr.bf16.mxu0 0
          %456 = vmatpush1.bf16.msra.mxu0 0
          %457 = vmatprep.subr.bf16.mxu0 0
          %458 = vmatpush1.bf16.msra.mxu0 0
          %459 = vmatprep.subr.bf16.mxu0 0
          %460 = vmatpush1.bf16.msra.mxu0 0
          %461 = vmatprep.subr.bf16.mxu0 0
          %462 = vmatpush1.bf16.msra.mxu0 0
          %463 = vmatprep.subr.bf16.mxu0 0
          %464 = vmatpush1.bf16.msra.mxu0 0
          %465 = vmatprep.mubr.bf16.mxu0 0
          %466 = vmatmul.mubr.bf16.gmra.mrb[0].mxu0 %v431
          %v467 = vpop.f32.mrb[0].mxu0
          %v468 = vadd.f32 %v415, %v467
          %v469 = vpop.f32.mrb[0].mxu0
          %v470 = vpop.f32.mrb[0].mxu0
          %v471 = vpop.f32.mrb[0].mxu0
          %472 = vdwg.mxu0
          %v473 = vmul.f32 %v468, 0.25
          %v474 = vpack.c.bf16 %v473, %v473
          %vm475 = vcmask 257024
          %476 = vst.msk [vmem:[#allocation2] sm:$0xf] %vm475, %v474
          %477 = vst.msk [vmem:[#allocation3] sm:$0xff] %vm429, 0.0
        $region76: #{tpu_custom_call.1} parent=43 // pred_fallthru
          _
        %s478 = smul.u32 %s33, 8
        %s479 = sshra.s32 %s478, 3
        %s480 = sand.u32 %s478, 7
        %s481 = smul.addr %s479, 4
        %s482 = scalar_lea.vmem %s344, %s481 [#allocation4]
        %v483 = vld [vmem:[%s482] sm:$0xf]
        %v484 = vld [vmem:[#allocation10] sm:$0xf]
        %v485 = vld [vmem:[#allocation10 + $0x4] sm:$0xf]
        %v486 = vld [vmem:[#allocation10 + $0x8] sm:$0xf]
        %v487 = vld [vmem:[#allocation10 + $0xc] sm:$0xf]
        %v488 = vld [vmem:[#allocation12] sm:$0x1]
        %v490 = vlaneseq
        %v491 = vshrl.u32 %v490, 7
        %v492 = vsub.s32 0, %v491
        %v493 = vrot.slane %v488, %v492
        %v499 = vunpack.c.l.b16 %v484
        %v500 = vunpack.c.l.b16 %v485
        %v501 = vunpack.c.l.b16 %v486
        %v502 = vunpack.c.l.b16 %v487
        %v503 = vpack.c.b16 %v500, %v499
        %v504 = vpack.c.b16 %v502, %v501
        %vm507 = vcmask 261120
        %v509 = vsel %vm507, %v483, 0
        %511 = vmatprep.subr.bf16.mxu0 0
        %512 = vmatpush1.bf16.msra.mxu0 %v503
        %513 = vmatprep.subr.bf16.mxu0 0
        %514 = vmatpush1.bf16.msra.mxu0 %v504
        %515 = vmatprep.subr.bf16.mxu0 0
        %516 = vmatpush1.bf16.msra.mxu0 0
        %517 = vmatprep.subr.bf16.mxu0 0
        %518 = vmatpush1.bf16.msra.mxu0 0
        %519 = vmatprep.subr.bf16.mxu0 0
        %520 = vmatpush1.bf16.msra.mxu0 0
        %521 = vmatprep.subr.bf16.mxu0 0
        %522 = vmatpush1.bf16.msra.mxu0 0
        %523 = vmatprep.subr.bf16.mxu0 0
        %524 = vmatpush1.bf16.msra.mxu0 0
        %525 = vmatprep.subr.bf16.mxu0 0
        %526 = vmatpush1.bf16.msra.mxu0 0
        %527 = vmatprep.subr.bf16.mxu0 0
        %528 = vmatpush1.bf16.msra.mxu0 0
        %529 = vmatprep.subr.bf16.mxu0 0
        %530 = vmatpush1.bf16.msra.mxu0 0
        %531 = vmatprep.subr.bf16.mxu0 0
        %532 = vmatpush1.bf16.msra.mxu0 0
        %533 = vmatprep.subr.bf16.mxu0 0
        %534 = vmatpush1.bf16.msra.mxu0 0
        %535 = vmatprep.subr.bf16.mxu0 0
        %536 = vmatpush1.bf16.msra.mxu0 0
        %537 = vmatprep.subr.bf16.mxu0 0
        %538 = vmatpush1.bf16.msra.mxu0 0
        %539 = vmatprep.subr.bf16.mxu0 0
        %540 = vmatpush1.bf16.msra.mxu0 0
        %541 = vmatprep.subr.bf16.mxu0 0
        %542 = vmatpush1.bf16.msra.mxu0 0
        %543 = vmatprep.mubr.bf16.mxu0 0
        %544 = vmatmul.mubr.bf16.gmra.mrb[0].mxu0 %v509
        %v545 = vpop.f32.mrb[0].mxu0
        %v546 = vadd.f32 %v493, %v545
        %v547 = vpop.f32.mrb[0].mxu0
        %v548 = vpop.f32.mrb[0].mxu0
        %v549 = vpop.f32.mrb[0].mxu0
        %550 = vdwg.mxu0
        %v551 = vpack.c.bf16 %v546, %v546
        %v552 = vld [vmem:[#allocation2] sm:$0xf]
        %vm553 = vcmask 130048
        %v555 = vsel %vm553, %v552, 0
        %v558 = vsel %vm553, %v551, 0
        %560 = vmatprep.subr.bf16.mxu0 0
        %561 = vmatpush1.bf16.xpose.msra.mxu0 %v558
        %562 = vmatprep.subr.bf16.mxu0 0
        %563 = vmatpush1.bf16.xpose.msra.mxu0 0
        %564 = vmatprep.subr.bf16.mxu0 0
        %565 = vmatpush1.bf16.xpose.msra.mxu0 0
        %566 = vmatprep.subr.bf16.mxu0 0
        %567 = vmatpush1.bf16.xpose.msra.mxu0 0
        %568 = vmatprep.subr.bf16.mxu0 0
        %569 = vmatpush1.bf16.xpose.msra.mxu0 0
        %570 = vmatprep.subr.bf16.mxu0 0
        %571 = vmatpush1.bf16.xpose.msra.mxu0 0
        %572 = vmatprep.subr.bf16.mxu0 0
        %573 = vmatpush1.bf16.xpose.msra.mxu0 0
        %574 = vmatprep.subr.bf16.mxu0 0
        %575 = vmatpush1.bf16.xpose.msra.mxu0 0
        %576 = vmatprep.subr.bf16.mxu0 0
        %577 = vmatpush1.bf16.xpose.msra.mxu0 0
        %578 = vmatprep.subr.bf16.mxu0 0
        %579 = vmatpush1.bf16.xpose.msra.mxu0 0
        %580 = vmatprep.subr.bf16.mxu0 0
        %581 = vmatpush1.bf16.xpose.msra.mxu0 0
        %582 = vmatprep.subr.bf16.mxu0 0
        %583 = vmatpush1.bf16.xpose.msra.mxu0 0
        %584 = vmatprep.subr.bf16.mxu0 0
        %585 = vmatpush1.bf16.xpose.msra.mxu0 0
        %586 = vmatprep.subr.bf16.mxu0 0
        %587 = vmatpush1.bf16.xpose.msra.mxu0 0
        %588 = vmatprep.subr.bf16.mxu0 0
        %589 = vmatpush1.bf16.xpose.msra.mxu0 0
        %590 = vmatprep.subr.bf16.mxu0 0
        %591 = vmatpush1.bf16.xpose.msra.mxu0 0
        %592 = vmatprep.mubr.bf16.mxu0 0
        %593 = vmatmul.mubr.bf16.gmra.mrb[0].mxu0 %v555
        %v594 = vpop.f32.mrb[0].mxu0
        %v595 = vadd.f32 0.0, %v594
        %v596 = vpop.f32.mrb[0].mxu0
        %v597 = vpop.f32.mrb[0].mxu0
        %v598 = vpop.f32.mrb[0].mxu0
        %599 = vdwg.mxu0
        %vm600 = vcmask 64512
        %v601 = vsel %vm600, %v595, -inf
        %v602 = vrot.slane %v601, 4
        %v603 = vmax.f32 %v601, %v602
        %v604 = vrot.slane %v603, 2
        %v605 = vmax.f32 %v603, %v604
        %v606 = vrot.slane %v605, 1
        %v607 = vmax.f32 %v605, %v606
        %v608 = vsub.f32 %v595, %v607
        %v609 = vmul.f32 %v608, 1.442695
        %v610 = vpow.pop %v609
        %v611 = vsel %vm600, %v610, 0.0
        %v612 = vrot.slane %v611, 4
        %v613 = vadd.f32 %v611, %v612
        %v614 = vrot.slane %v613, 2
        %v615 = vadd.f32 %v613, %v614
        %v616 = vrot.slane %v615, 1
        %v617 = vadd.f32 %v615, %v616
        %v618 = vrcp.pop %v617
        %v619 = vmul.f32 %v610, %v618
        %v620 = vld [vmem:[#allocation3] sm:$0xff]
        %v621 = vpack.c.bf16 %v619, %v619
        %623 = vrot.lane.b32.xlu0 %v551, 96
        %v624 = vpop.permute.xlu0 %623
        %v626 = vsel %vm600, %v621, 0
        %vm628 = vcmask 1043456
        %v630 = vsel %vm628, %v624, 0
        %632 = vmatprep.subr.bf16.mxu0 0
        %633 = vmatpush1.bf16.msra.mxu0 %v630
        %634 = vmatprep.subr.bf16.mxu0 0
        %635 = vmatpush1.bf16.msra.mxu0 0
        %636 = vmatprep.subr.bf16.mxu0 0
        %637 = vmatpush1.bf16.msra.mxu0 0
        %638 = vmatprep.subr.bf16.mxu0 0
        %639 = vmatpush1.bf16.msra.mxu0 0
        %640 = vmatprep.subr.bf16.mxu0 0
        %641 = vmatpush1.bf16.msra.mxu0 0
        %642 = vmatprep.subr.bf16.mxu0 0
        %643 = vmatpush1.bf16.msra.mxu0 0
        %644 = vmatprep.subr.bf16.mxu0 0
        %645 = vmatpush1.bf16.msra.mxu0 0
        %646 = vmatprep.subr.bf16.mxu0 0
        %647 = vmatpush1.bf16.msra.mxu0 0
        %648 = vmatprep.subr.bf16.mxu0 0
        %649 = vmatpush1.bf16.msra.mxu0 0
        %650 = vmatprep.subr.bf16.mxu0 0
        %651 = vmatpush1.bf16.msra.mxu0 0
        %652 = vmatprep.subr.bf16.mxu0 0
        %653 = vmatpush1.bf16.msra.mxu0 0
        %654 = vmatprep.subr.bf16.mxu0 0
        %655 = vmatpush1.bf16.msra.mxu0 0
        %656 = vmatprep.subr.bf16.mxu0 0
        %657 = vmatpush1.bf16.msra.mxu0 0
        %658 = vmatprep.subr.bf16.mxu0 0
        %659 = vmatpush1.bf16.msra.mxu0 0
        %660 = vmatprep.subr.bf16.mxu0 0
        %661 = vmatpush1.bf16.msra.mxu0 0
        %662 = vmatprep.subr.bf16.mxu0 0
        %663 = vmatpush1.bf16.msra.mxu0 0
        %664 = vmatprep.mubr.bf16.mxu0 0
        %665 = vmatmul.mubr.bf16.gmra.mrb[0].mxu0 %v626
        %v666 = vpop.f32.mrb[0].mxu0
        %v667 = vadd.f32 0.0, %v666
        %v668 = vpop.f32.mrb[0].mxu0
        %v669 = vpop.f32.mrb[0].mxu0
        %v670 = vpop.f32.mrb[0].mxu0
        %671 = vdwg.mxu0
        %v672 = vadd.f32 %v620, %v667
        %673 = vst.msk [vmem:[#allocation3] sm:$0xff] %vm553, %v672
        %v674 = vld [vmem:[#allocation2] sm:$0xf]
        %v676 = vunpack.c.l.b16 %v674
        %v677 = vpack.c.b16 %v676, %v676
        %678 = vrot.lane.b32.xlu0 %v677, 112
        %v679 = vpop.permute.xlu0 %678
        %680 = vrot.lane.b32.xlu0 %v551, 112
        %v681 = vpop.permute.xlu0 %680
        %v683 = vsel %vm553, %v679, 0
        %v686 = vsel %vm553, %v681, 0
        %688 = vmatprep.subr.bf16.mxu0 0
        %689 = vmatpush1.bf16.xpose.msra.mxu0 %v686
        %690 = vmatprep.subr.bf16.mxu0 0
        %691 = vmatpush1.bf16.xpose.msra.mxu0 0
        %692 = vmatprep.subr.bf16.mxu0 0
        %693 = vmatpush1.bf16.xpose.msra.mxu0 0
        %694 = vmatprep.subr.bf16.mxu0 0
        %695 = vmatpush1.bf16.xpose.msra.mxu0 0
        %696 = vmatprep.subr.bf16.mxu0 0
        %697 = vmatpush1.bf16.xpose.msra.mxu0 0
        %698 = vmatprep.subr.bf16.mxu0 0
        %699 = vmatpush1.bf16.xpose.msra.mxu0 0
        %700 = vmatprep.subr.bf16.mxu0 0
        %701 = vmatpush1.bf16.xpose.msra.mxu0 0
        %702 = vmatprep.subr.bf16.mxu0 0
        %703 = vmatpush1.bf16.xpose.msra.mxu0 0
        %704 = vmatprep.subr.bf16.mxu0 0
        %705 = vmatpush1.bf16.xpose.msra.mxu0 0
        %706 = vmatprep.subr.bf16.mxu0 0
        %707 = vmatpush1.bf16.xpose.msra.mxu0 0
        %708 = vmatprep.subr.bf16.mxu0 0
        %709 = vmatpush1.bf16.xpose.msra.mxu0 0
        %710 = vmatprep.subr.bf16.mxu0 0
        %711 = vmatpush1.bf16.xpose.msra.mxu0 0
        %712 = vmatprep.subr.bf16.mxu0 0
        %713 = vmatpush1.bf16.xpose.msra.mxu0 0
        %714 = vmatprep.subr.bf16.mxu0 0
        %715 = vmatpush1.bf16.xpose.msra.mxu0 0
        %716 = vmatprep.subr.bf16.mxu0 0
        %717 = vmatpush1.bf16.xpose.msra.mxu0 0
        %718 = vmatprep.subr.bf16.mxu0 0
        %719 = vmatpush1.bf16.xpose.msra.mxu0 0
        %720 = vmatprep.mubr.bf16.mxu0 0
        %721 = vmatmul.mubr.bf16.gmra.mrb[0].mxu0 %v683
        %v722 = vpop.f32.mrb[0].mxu0
        %v723 = vadd.f32 0.0, %v722
        %v724 = vpop.f32.mrb[0].mxu0
        %v725 = vpop.f32.mrb[0].mxu0
        %v726 = vpop.f32.mrb[0].mxu0
        %727 = vdwg.mxu0
        %v728 = vsel %vm600, %v723, -inf
        %v729 = vrot.slane %v728, 4
        %v730 = vmax.f32 %v728, %v729
        %v731 = vrot.slane %v730, 2
        %v732 = vmax.f32 %v730, %v731
        %v733 = vrot.slane %v732, 1
        %v734 = vmax.f32 %v732, %v733
        %v735 = vsub.f32 %v723, %v734
        %v736 = vmul.f32 %v735, 1.442695
        %v737 = vpow.pop %v736
        %v738 = vsel %vm600, %v737, 0.0
        %v739 = vrot.slane %v738, 4
        %v740 = vadd.f32 %v738, %v739
        %v741 = vrot.slane %v740, 2
        %v742 = vadd.f32 %v740, %v741
        %v743 = vrot.slane %v742, 1
        %v744 = vadd.f32 %v742, %v743
        %v745 = vrcp.pop %v744
        %v746 = vmul.f32 %v737, %v745
        %v747 = vld [vmem:[#allocation3] sm:$0xff]
        %v748 = vpack.c.bf16 %v746, %v746
        %749 = vrot.lane.b32.xlu0 %v551, 80
        %v750 = vpop.permute.xlu0 %749
        %v752 = vsel %vm600, %v748, 0
        %v755 = vsel %vm628, %v750, 0
        %757 = vmatprep.subr.bf16.mxu0 0
        %758 = vmatpush1.bf16.msra.mxu0 %v755
        %759 = vmatprep.subr.bf16.mxu0 0
        %760 = vmatpush1.bf16.msra.mxu0 0
        %761 = vmatprep.subr.bf16.mxu0 0
        %762 = vmatpush1.bf16.msra.mxu0 0
        %763 = vmatprep.subr.bf16.mxu0 0
        %764 = vmatpush1.bf16.msra.mxu0 0
        %765 = vmatprep.subr.bf16.mxu0 0
        %766 = vmatpush1.bf16.msra.mxu0 0
        %767 = vmatprep.subr.bf16.mxu0 0
        %768 = vmatpush1.bf16.msra.mxu0 0
        %769 = vmatprep.subr.bf16.mxu0 0
        %770 = vmatpush1.bf16.msra.mxu0 0
        %771 = vmatprep.subr.bf16.mxu0 0
        %772 = vmatpush1.bf16.msra.mxu0 0
        %773 = vmatprep.subr.bf16.mxu0 0
        %774 = vmatpush1.bf16.msra.mxu0 0
        %775 = vmatprep.subr.bf16.mxu0 0
        %776 = vmatpush1.bf16.msra.mxu0 0
        %777 = vmatprep.subr.bf16.mxu0 0
        %778 = vmatpush1.bf16.msra.mxu0 0
        %779 = vmatprep.subr.bf16.mxu0 0
        %780 = vmatpush1.bf16.msra.mxu0 0
        %781 = vmatprep.subr.bf16.mxu0 0
        %782 = vmatpush1.bf16.msra.mxu0 0
        %783 = vmatprep.subr.bf16.mxu0 0
        %784 = vmatpush1.bf16.msra.mxu0 0
        %785 = vmatprep.subr.bf16.mxu0 0
        %786 = vmatpush1.bf16.msra.mxu0 0
        %787 = vmatprep.subr.bf16.mxu0 0
        %788 = vmatpush1.bf16.msra.mxu0 0
        %789 = vmatprep.mubr.bf16.mxu0 0
        %790 = vmatmul.mubr.bf16.gmra.mrb[0].mxu0 %v752
        %v791 = vpop.f32.mrb[0].mxu0
        %v792 = vadd.f32 0.0, %v791
        %v793 = vpop.f32.mrb[0].mxu0
        %v794 = vpop.f32.mrb[0].mxu0
        %v795 = vpop.f32.mrb[0].mxu0
        %796 = vdwg.mxu0
        %798 = vrot.lane.b32.xlu0 %v792, 16
        %v799 = vpop.permute.xlu0 %798
        %v801 = vadd.f32 %v747, %v799
        %vm802 = vcmask 261248
        %803 = vst.msk [vmem:[#allocation3] sm:$0xff] %vm802, %v801
        // Predicated region
        $region77: #{tpu_custom_call.1} parent=43 // pred_check
          %p804 = pneg %p395
        $region78: #{tpu_custom_call.1} parent=43 // pred_check_branch
          %806 = sbr.rel (%p804) target = $region80
        $region79: #{tpu_custom_call.1} parent=43 // pred_region
          %v807 = vld [vmem:[#allocation3] sm:$0xff]
          %v808 = vpack.c.bf16 %v807, %v807
          %v809 = vld [vmem:[#allocation13] sm:$0xf]
          %v810 = vld [vmem:[#allocation13 + $0x4] sm:$0xf]
          %v811 = vld [vmem:[#allocation13 + $0x8] sm:$0xf]
          %v812 = vld [vmem:[#allocation13 + $0xc] sm:$0xf]
          %v817 = vunpack.c.l.b16 %v809
          %v818 = vunpack.c.l.b16 %v810
          %v819 = vunpack.c.l.b16 %v811
          %v820 = vunpack.c.l.b16 %v812
          %v821 = vpack.c.b16 %v818, %v817
          %v822 = vpack.c.b16 %v820, %v819
          %v826 = vsel %vm507, %v808, 0
          %828 = vmatprep.subr.bf16.mxu0 0
          %829 = vmatpush1.bf16.msra.mxu0 %v821
          %830 = vmatprep.subr.bf16.mxu0 0
          %831 = vmatpush1.bf16.msra.mxu0 %v822
          %832 = vmatprep.subr.bf16.mxu0 0
          %833 = vmatpush1.bf16.msra.mxu0 0
          %834 = vmatprep.subr.bf16.mxu0 0
          %835 = vmatpush1.bf16.msra.mxu0 0
          %836 = vmatprep.subr.bf16.mxu0 0
          %837 = vmatpush1.bf16.msra.mxu0 0
          %838 = vmatprep.subr.bf16.mxu0 0
          %839 = vmatpush1.bf16.msra.mxu0 0
          %840 = vmatprep.subr.bf16.mxu0 0
          %841 = vmatpush1.bf16.msra.mxu0 0
          %842 = vmatprep.subr.bf16.mxu0 0
          %843 = vmatpush1.bf16.msra.mxu0 0
          %844 = vmatprep.subr.bf16.mxu0 0
          %845 = vmatpush1.bf16.msra.mxu0 0
          %846 = vmatprep.subr.bf16.mxu0 0
          %847 = vmatpush1.bf16.msra.mxu0 0
          %848 = vmatprep.subr.bf16.mxu0 0
          %849 = vmatpush1.bf16.msra.mxu0 0
          %850 = vmatprep.subr.bf16.mxu0 0
          %851 = vmatpush1.bf16.msra.mxu0 0
          %852 = vmatprep.subr.bf16.mxu0 0
          %853 = vmatpush1.bf16.msra.mxu0 0
          %854 = vmatprep.subr.bf16.mxu0 0
          %855 = vmatpush1.bf16.msra.mxu0 0
          %856 = vmatprep.subr.bf16.mxu0 0
          %857 = vmatpush1.bf16.msra.mxu0 0
          %858 = vmatprep.subr.bf16.mxu0 0
          %859 = vmatpush1.bf16.msra.mxu0 0
          %860 = vmatprep.mubr.bf16.mxu0 0
          %861 = vmatmul.mubr.bf16.gmra.mrb[0].mxu0 %v826
          %v862 = vpop.f32.mrb[0].mxu0
          %v863 = vadd.f32 0.0, %v862
          %v864 = vpop.f32.mrb[0].mxu0
          %v865 = vpop.f32.mrb[0].mxu0
          %v866 = vpop.f32.mrb[0].mxu0
          %867 = vdwg.mxu0
          %v868 = vld [vmem:[%s392] sm:$0xff]
          %v869 = vadd.f32 %v868, %v863
          %870 = vst.msk [vmem:[%s392] sm:$0xff] %vm507, %v869
        $region80: #{tpu_custom_call.1} parent=43 // pred_fallthru
          _
        %s871 = sand.u32 %s209, 1
        %s872 = scalar_lea.sflag [#allocation6], %s871
        %s873 = sand.u32 %s209, 1
        %s874 = smul.addr %s873, 8
        %s875 = scalar_lea.vmem [#allocation15], %s874
        // Predicated region
        $region81: #{tpu_custom_call.1} parent=43 // pred_check
          %p876 = pneg %p219
        $region82: #{tpu_custom_call.1} parent=43 // pred_check_branch
          %878 = sbr.rel (%p876) target = $region84
        $region83: #{tpu_custom_call.1} parent=43 // pred_region
          %s880 = ssub.s32 128, 128
          %881 = vsyncadd %s872, %s880
          %s882 = smul.addr %s31, 128
          %s883 = scalar_lea.hbm %s6, %s882
          %s885 = sshll.u32 %s875, 4
          %s886 = int_to_ptr.vmem [resolvable:$true] %s885
          %888 = dma.vmem_to_hbm [thread:$0]  %s886, 128, %s883, %s872
        $region84: #{tpu_custom_call.1} parent=43 // pred_fallthru
          _
      $region44: #{tpu_custom_call.1} parent=5 // pred_fallthru
        _
      %p889 = scmp.le.s32.totalorder 2, %s21
      // Predicated region
      $region85: #{tpu_custom_call.1} parent=5 // pred_check
        %p890 = pneg %p889
      $region86: #{tpu_custom_call.1} parent=5 // pred_check_branch
        %892 = sbr.rel (%p890) target = $region88
      $region87: #{tpu_custom_call.1} parent=5 // pred_region
        %s893 = ssub.s32 %s21, 2
        // Predicated region
        $region89: #{tpu_custom_call.1} parent=87 // pred_check
          %p894 = pneg %p225
        $region90: #{tpu_custom_call.1} parent=87 // pred_check_branch
          %896 = sbr.rel (%p894) target = $region92
        $region91: #{tpu_custom_call.1} parent=87 // pred_region
          %s897 = sand.u32 %s210, 1
          %s898 = scalar_lea.sflag [#allocation6], %s897
          %s899 = sand.u32 %s210, 1
          %s900 = smul.addr %s899, 8
          %s901 = scalar_lea.vmem [#allocation15], %s900
          %902 = dma.done %s898, 128
        $region92: #{tpu_custom_call.1} parent=87 // pred_fallthru
          _
      $region88: #{tpu_custom_call.1} parent=5 // pred_fallthru
        _
    $region6: #{tpu_custom_call.1} parent=1 // loop_footer
      %s25 = sadd.s32 1, %s21
    $region7: #{tpu_custom_call.1} parent=1 // loop_footer_branch
      %20 = sbr.rel target = $region3
    $region8: #{tpu_custom_call.1} parent=1 // loop_exit
      _
    %903 = vsyncpa [#allocation5], 1
    %s904 = scalar_lea.sflag [#allocation5], 1
    %905 = vsyncpa %s904, 1
    %906 = vsyncpa [#allocation8], 1
    %907 = vsyncpa [#allocation11], 1
    %908 = vsyncpa [#allocation14], 1
    %909 = vsyncpa [#allocation6], 1
    %s910 = scalar_lea.sflag [#allocation6], 1
    %911 = vsyncpa %s910, 1

</llo_original>
